<compile_context>
chip_gen: v6e
topology: v6e:2x2x1
jax: 0.10.0
libtpu: 0.0.40
codegen_flags: <defaults>
</compile_context>

<pallas_src>
import functools
import math

import jax
import jax.numpy as jnp
from jax.experimental import pallas as pl
from jax.experimental.pallas import tpu as pltpu

EPS = 1e-10


# ----------------------------- coefficient fns ------------------------------
# Stand-ins for the user-supplied A_fun/a_fun/B_fun/b_fun constructor args of
# NNK_Asym_Kernel (real-valued, deterministic choices -> the cfloat einsum and
# trailing `.real` of the PyTorch code reduce to ordinary f32 math).
def a_fun(xi):          # forward-path per-xi coefficient (ab_fun for x)
    return xi


def b_fun(xi):          # weight-path per-xi coefficient (ab_fun for W)
    return xi


def B_fun(xis_vec, b_scalar):   # weight-path bias-dependent coefficient
    return jnp.exp(b_scalar * xis_vec)
# A_fun is evaluated but unused when is_weight=False, so it is omitted.


# ------------------------- pure-JAX reference helper ------------------------
def create_asym_feats_ref(xw, ab_coeffs, AB_coeffs, gs, M, num_rfs, is_weight):
    """JAX transcription of create_asym_feats (normalize=False, real path)."""
    renorm_gs = jnp.sqrt(1.0 + 4.0 * M) * ab_coeffs[:, None] * gs      # (R, dim)
    dot_products = xw @ renorm_gs.T                                    # (N, R)
    squared_xw = jnp.sum(xw * xw, axis=-1) * 0.5                       # (N,)
    correction = jnp.outer(squared_xw, ab_coeffs * ab_coeffs)          # (N, R)
    correction = correction + M * jnp.sum(gs * gs, axis=-1)[None, :]   # + M*||g_r||^2
    feats = (1.0 / math.sqrt(num_rfs)) * jnp.exp(dot_products - correction)
    if is_weight:
        feats = AB_coeffs * feats
    return feats


# ------------------------------- Pallas kernel ------------------------------
def _nnk_forward_kernel(x_ref, rg_ref, ab2_ref, cc_ref, w_ref, o_ref):
    x = x_ref[...]                                              # (TN, dim) f32
    sq_half = 0.5 * jnp.sum(x * x, axis=-1, keepdims=True)      # (TN, 1)

    # Fused +/- branches: single (TN, dim) x (dim, 2R) bf16 MXU matmul.
    z = jnp.dot(x.astype(jnp.bfloat16), rg_ref[...],
                preferred_element_type=jnp.float32)             # (TN, 2R) f32

    # correction = |x|^2/2 * ab^2 + M*||g_r||^2, kept inside the exponent so
    # exp never sees an unclamped argument. EUP-bound; these VPU ops are free.
    z = z - (sq_half * ab2_ref[...] + cc_ref[...])
    f = jnp.exp(z)                                              # f32 exp (EUP)

    # 1/sqrt(R) and the (1+4M)^(dim/4)/sqrt(2) output scale are already folded
    # into w_ref (bf16, zero-padded to a lane-dense 128-wide output).
    o_ref[...] = jnp.dot(f.astype(jnp.bfloat16), w_ref[...],
                         preferred_element_type=jnp.float32)    # (TN, n_out_pad)


def nnk_forward_pallas(x_in, rg_cat, ab2_cat, cc_cat, w_cat, *, tile_n=256):
    """x_in (N, dim) f32; rg_cat (dim, 2R) bf16; ab2_cat/cc_cat (1, 2R) f32;
    w_cat (2R, n_out_pad) bf16 with scales folded in. Returns (N, n_out_pad)."""
    N, dim = x_in.shape
    two_r = rg_cat.shape[1]
    n_out_pad = w_cat.shape[1]
    grid = (pl.cdiv(N, tile_n),)
    return pl.pallas_call(
        _nnk_forward_kernel,
        out_shape=jax.ShapeDtypeStruct((N, n_out_pad), jnp.float32),
        grid=grid,
        in_specs=[
            pl.BlockSpec((tile_n, dim), lambda i: (i, 0)),      # x tile (f32)
            pl.BlockSpec((dim, two_r), lambda i: (0, 0)),       # [G+|G-] renorm, T (bf16)
            pl.BlockSpec((1, two_r), lambda i: (0, 0)),         # [a+^2 | a-^2]
            pl.BlockSpec((1, two_r), lambda i: (0, 0)),         # [M||g||^2 | M||g||^2]
            pl.BlockSpec((two_r, n_out_pad), lambda i: (0, 0)), # scaled, padded weights^T (bf16)
        ],
        out_specs=pl.BlockSpec((tile_n, n_out_pad), lambda i: (i, 0)),
        compiler_params=pltpu.CompilerParams(
            dimension_semantics=("parallel",)),
    )(x_in, rg_cat, ab2_cat, cc_cat, w_cat)


# ----------------------------------- main ------------------------------------
if __name__ == "__main__":
    # Shapes consistent with the module:
    #   input_weights: (n_out, dim), b: (n_out,), xis: (num_rfs,),
    #   projection_matrix: (num_rfs, dim), x: (N_x, dim)
    N_x, dim, num_rfs, n_out = 512, 16, 128, 8
    M = 0.5
    normalize = False            # module constructed with normalize=False
    tile_n = 256                 # -> 2 grid steps: both v7x TCs busy

    key = jax.random.PRNGKey(0)
    k1, k2, k3, k4, k5 = jax.random.split(key, 5)
    input_weights = jax.random.normal(k1, (n_out, dim), jnp.float32)
    b = 0.1 * jax.random.normal(k2, (n_out,), jnp.float32)
    xis = 0.1 * jax.random.normal(k3, (num_rfs,), jnp.float32)
    # self.projection_matrix = Normal(0, 0.02, (num_rfs, dim))
    gs = 0.02 * jax.random.normal(k4, (num_rfs, dim), jnp.float32)
    x = jax.random.normal(k5, (N_x, dim), jnp.float32)

    # ---------------- __init__ equivalent (parameter setup, plain JAX) -------
    if not normalize:
        input_weights = input_weights / dim ** 0.25
        b = b / dim ** 0.25
    # TODO(synk): the normalize=True branch (F.normalize + bias min/max rescale)
    # is not implemented; this script fixes normalize=False.

    c = (1.0 / math.sqrt(2.0)) * (1.0 + 4.0 * M) ** (dim / 4.0)

    ab_w_plus = b_fun(xis)                     # vmap(b_fun)(xis).squeeze()
    ab_w_minus = b_fun(-xis)
    AB_plus = jax.vmap(B_fun, in_axes=(None, 0))(xis, b)        # (n_out, R)
    AB_minus = jax.vmap(B_fun, in_axes=(None, 0))(-xis, b)      # (n_out, R)
    rfv_plus = create_asym_feats_ref(input_weights, ab_w_plus, AB_plus,
                                     gs, M, num_rfs, is_weight=True)
    rfv_minus = create_asym_feats_ref(input_weights, ab_w_minus, AB_minus,
                                      gs, M, num_rfs, is_weight=True)
    weights = c * jnp.concatenate([rfv_plus, rfv_minus], axis=-1)  # (n_out, 2R)

    # ---------------- forward-pass operand prep (glue) -----------------------
    x_in = x / dim if not normalize else x
    a_plus = a_fun(xis)
    a_minus = a_fun(-xis)
    sqrt_1p4M = jnp.sqrt(1.0 + 4.0 * M)
    rg_plus_T = (sqrt_1p4M * a_plus[:, None] * gs).T            # (dim, R)
    rg_minus_T = (sqrt_1p4M * a_minus[:, None] * gs).T          # (dim, R)
    rg_cat = jnp.concatenate([rg_plus_T, rg_minus_T], axis=1)   # (dim, 2R)
    rg_cat = rg_cat.astype(jnp.bfloat16)

    ab2_cat = jnp.concatenate([a_plus * a_plus,
                               a_minus * a_minus])[None, :]     # (1, 2R) f32
    cc = M * jnp.sum(gs * gs, axis=-1)                          # (R,)
    cc_cat = jnp.concatenate([cc, cc])[None, :]                 # (1, 2R) f32

    # Fold 1/sqrt(R) (removed from the in-kernel feature map) and the forward
    # output scale c into the weights; zero-pad n_out to a lane-dense 128.
    inv_sqrt_rfs = 1.0 / math.sqrt(num_rfs)
    n_out_pad = ((n_out + 127) // 128) * 128
    w_cat = (c * inv_sqrt_rfs) * weights.T                      # (2R, n_out) f32
    w_cat = jnp.pad(w_cat, ((0, 0), (0, n_out_pad - n_out)))
    w_cat = w_cat.astype(jnp.bfloat16)                          # (2R, n_out_pad)

    # ---------------- Pallas forward ------------------------------------------
    out_pad = nnk_forward_pallas(x_in, rg_cat, ab2_cat, cc_cat, w_cat,
                                 tile_n=tile_n)
    out = out_pad[:, :n_out]
    out = jax.block_until_ready(out)

    # ---------------- pure-JAX f32 reference of the PyTorch forward -----------
    fp_ref = create_asym_feats_ref(x_in, a_plus, None, gs, M, num_rfs, False)
    fm_ref = create_asym_feats_ref(x_in, a_minus, None, gs, M, num_rfs, False)
    output_x = c * jnp.concatenate([fp_ref, fm_ref], axis=-1)   # (N_x, 2R)
    ref = output_x @ weights.T                                  # (N_x, n_out); .real is identity

    assert out.shape == (N_x, n_out)
    # bf16 matmul operands -> compare at a bf16-appropriate relative tolerance.
    rel_err = jnp.max(jnp.abs(out - ref)) / (jnp.max(jnp.abs(ref)) + EPS)
    assert rel_err < 2e-2, f"max relative err {rel_err}"
    print("KERNEL_OK")
</pallas_src>

<mosaic_0001>
module attributes {stable_mosaic.version = 11 : i64} {
  func.func @_nnk_forward_kernel(%arg0: i32, %arg1: memref<256x16xf32, #tpu.memory_space<vmem>>, %arg2: memref<16x256xbf16, #tpu.memory_space<vmem>>, %arg3: memref<1x256xf32, #tpu.memory_space<vmem>>, %arg4: memref<1x256xf32, #tpu.memory_space<vmem>>, %arg5: memref<256x128xbf16, #tpu.memory_space<vmem>>, %arg6: memref<256x128xf32, #tpu.memory_space<vmem>>) attributes {dimension_semantics = [#tpu.dimension_semantics<parallel>], iteration_bounds = array<i64: 2>, scalar_prefetch = 0 : i64, scratch_operands = 0 : i64, tpu.core_type = #tpu.core_type<tc>, window_params = [{transform_indices = @transform_0, window_bounds = array<i64: 256, 16>}, {pipeline_mode = #tpu.pipeline_mode<synchronous>, transform_indices = @transform_1, window_bounds = array<i64: 16, 256>}, {pipeline_mode = #tpu.pipeline_mode<synchronous>, transform_indices = @transform_2, window_bounds = array<i64: 1, 256>}, {pipeline_mode = #tpu.pipeline_mode<synchronous>, transform_indices = @transform_3, window_bounds = array<i64: 1, 256>}, {pipeline_mode = #tpu.pipeline_mode<synchronous>, transform_indices = @transform_4, window_bounds = array<i64: 256, 128>}, {transform_indices = @transform_5, window_bounds = array<i64: 256, 128>}]} {
    %c0 = arith.constant 0 : index
    %c0_0 = arith.constant 0 : index
    %0 = vector.load %arg1[%c0, %c0_0] : memref<256x16xf32, #tpu.memory_space<vmem>>, vector<256x16xf32>
    %1 = arith.mulf %0, %0 : vector<256x16xf32>
    %cst = arith.constant dense<0.000000e+00> : vector<256xf32>
    %2 = vector.multi_reduction <add>, %1, %cst [1] : vector<256x16xf32> to vector<256xf32>
    %3 = vector.shape_cast %2 : vector<256xf32> to vector<256x1xf32>
    %cst_1 = arith.constant 5.000000e-01 : f32
    %4 = vector.broadcast %cst_1 : f32 to vector<256x1xf32>
    %5 = arith.mulf %4, %3 : vector<256x1xf32>
    %6 = arith.truncf %0 : vector<256x16xf32> to vector<256x16xbf16>
    %c0_2 = arith.constant 0 : index
    %c0_3 = arith.constant 0 : index
    %7 = vector.load %arg2[%c0_2, %c0_3] : memref<16x256xbf16, #tpu.memory_space<vmem>>, vector<16x256xbf16>
    %cst_4 = arith.constant dense<0.000000e+00> : vector<256x256xf32>
    %8 = tpu.matmul %6, %7, %cst_4 {dimension_numbers = #tpu.dot_dimension_numbers<[1], [0], [0], [1], [0, 0, 1, 1], [], []>} : vector<256x16xbf16>, vector<16x256xbf16>, vector<256x256xf32> -> vector<256x256xf32>
    %c0_5 = arith.constant 0 : index
    %c0_6 = arith.constant 0 : index
    %9 = vector.load %arg3[%c0_5, %c0_6] : memref<1x256xf32, #tpu.memory_space<vmem>>, vector<1x256xf32>
    %10 = vector.broadcast %5 : vector<256x1xf32> to vector<256x256xf32>
    %11 = vector.broadcast %9 : vector<1x256xf32> to vector<256x256xf32>
    %12 = arith.mulf %10, %11 : vector<256x256xf32>
    %c0_7 = arith.constant 0 : index
    %c0_8 = arith.constant 0 : index
    %13 = vector.load %arg4[%c0_7, %c0_8] : memref<1x256xf32, #tpu.memory_space<vmem>>, vector<1x256xf32>
    %14 = vector.broadcast %13 : vector<1x256xf32> to vector<256x256xf32>
    %15 = arith.addf %12, %14 : vector<256x256xf32>
    %16 = arith.subf %8, %15 : vector<256x256xf32>
    %17 = math.exp %16 : vector<256x256xf32>
    %18 = arith.truncf %17 : vector<256x256xf32> to vector<256x256xbf16>
    %c0_9 = arith.constant 0 : index
    %c0_10 = arith.constant 0 : index
    %19 = vector.load %arg5[%c0_9, %c0_10] : memref<256x128xbf16, #tpu.memory_space<vmem>>, vector<256x128xbf16>
    %cst_11 = arith.constant dense<0.000000e+00> : vector<256x128xf32>
    %20 = tpu.matmul %18, %19, %cst_11 {dimension_numbers = #tpu.dot_dimension_numbers<[1], [0], [0], [1], [0, 0, 1, 1], [], []>} : vector<256x256xbf16>, vector<256x128xbf16>, vector<256x128xf32> -> vector<256x128xf32>
    %c0_12 = arith.constant 0 : index
    %c0_13 = arith.constant 0 : index
    %21 = vector.load %arg6[%c0_12, %c0_13] : memref<256x128xf32, #tpu.memory_space<vmem>>, vector<256x128xf32>
    tpu.vector_store %arg6[%c0_12, %c0_13], %20 {strides = array<i32>} : memref<256x128xf32, #tpu.memory_space<vmem>>, vector<256x128xf32>,
    return
  }
  func.func @transform_0(%arg0: i32) -> (i32, i32) {
    %c0_i32 = arith.constant 0 : i32
    %c0_i32_0 = arith.constant 0 : i32
    return %arg0, %c0_i32 : i32, i32
  }
  func.func @transform_1(%arg0: i32) -> (i32, i32) {
    %c0_i32 = arith.constant 0 : i32
    %c0_i32_0 = arith.constant 0 : i32
    %c0_i32_1 = arith.constant 0 : i32
    return %c0_i32, %c0_i32_0 : i32, i32
  }
  func.func @transform_2(%arg0: i32) -> (i32, i32) {
    %c0_i32 = arith.constant 0 : i32
    %c0_i32_0 = arith.constant 0 : i32
    %c0_i32_1 = arith.constant 0 : i32
    return %c0_i32, %c0_i32_0 : i32, i32
  }
  func.func @transform_3(%arg0: i32) -> (i32, i32) {
    %c0_i32 = arith.constant 0 : i32
    %c0_i32_0 = arith.constant 0 : i32
    %c0_i32_1 = arith.constant 0 : i32
    return %c0_i32, %c0_i32_0 : i32, i32
  }
  func.func @transform_4(%arg0: i32) -> (i32, i32) {
    %c0_i32 = arith.constant 0 : i32
    %c0_i32_0 = arith.constant 0 : i32
    %c0_i32_1 = arith.constant 0 : i32
    return %c0_i32, %c0_i32_0 : i32, i32
  }
  func.func @transform_5(%arg0: i32) -> (i32, i32) {
    %c0_i32 = arith.constant 0 : i32
    %c0_i32_0 = arith.constant 0 : i32
    return %arg0, %c0_i32 : i32, i32
  }
}

</mosaic_0001>

<llo_original>
// kernel: tpu_custom_call.1
$region0: #{tpu_custom_call.1}
  #allocation0 [shape = 'u32[]', space=smem, size = 0x4, offset = 0x4, fixed_abs, tag = 'smem constant byte address 0x4 - core index']
  #allocation1 [shape = 'u32[144,128]{1,0:T(1,128)}', space=vmem, size = 0x12000, scoped, tag = 'internal scratch']
  %s0 = inlined_call_operand.vmem [shape: f32[512,16], index: 0, kind: input, shape index: {}]
  %s1 = inlined_call_operand.vmem [shape: bf16[16,256], index: 1, kind: input, shape index: {}]
  %s2 = inlined_call_operand.vmem [shape: f32[1,256], index: 2, kind: input, shape index: {}]
  %s3 = inlined_call_operand.vmem [shape: f32[1,256], index: 3, kind: input, shape index: {}]
  %s4 = inlined_call_operand.vmem [shape: bf16[256,128], index: 4, kind: input, shape index: {}]
  %s5 = inlined_call_operand.hbm [shape: f32[512,128], index: 5, kind: output, shape index: {}]
  %s6 = sld [smem:[#allocation0]]
  $region53: #{tpu_custom_call.1} parent=0
    _
  %s8 = ssub.s32 1, %s6
  %s9 = scalar_select 0, %s8, %s6
  $region1: #{tpu_custom_call.1} parent=0
    #allocation2 [shape = 'u8[262144]{0}', space=vmem, size = 0x40000, scoped, tag = 'output window, operand 0']
    #allocation3 [shape = 's32[2]{0}', space=sflag, size = 0x8, scoped, tag = 'scoped memory for tpu_custom_call.1']
    %10 = vsyncpa [#allocation3], 0
    %s11 = scalar_lea.sflag [#allocation3], 1
    %12 = vsyncpa %s11, 0
    loop: start=0, step=1, limit=4
    $region2: #{tpu_custom_call.1} parent=1 // loop_pre_header
      _
    $region3: #{tpu_custom_call.1} parent=1 // loop_header
      %s14 = sphi 0, %s18
      %p15 = scmp.ge.s32.totalorder %s14, 4
      %s24 = sphi 0, %s26
      %s27 = sphi 0, %s24
      %s28 = sphi 0, %s27
      %s44 = sphi 0, %s28
      %s48 = sphi 0, %s48
      %s50 = sphi 0, %s48
      %s51 = sphi 0, %s50
      %s65 = sphi 0, %s51
      %s69 = sphi 0, %s69
      %s71 = sphi 0, %s69
      %s72 = sphi 0, %s71
      %s86 = sphi 0, %s72
      %s90 = sphi 0, %s90
      %s92 = sphi 0, %s90
      %s93 = sphi 0, %s92
      %s107 = sphi 0, %s93
      %s111 = sphi 0, %s111
      %s113 = sphi 0, %s111
      %s114 = sphi 0, %s113
      %s128 = sphi 0, %s114
      %s134 = sphi 0, %s136
      %s137 = sphi 0, %s134
      %s138 = sphi 0, %s137
      %s154 = sphi 0, %s138
    $region4: #{tpu_custom_call.1} parent=1 // loop_header_branch
      %17 = sbr.rel (%p15) target = $region8
    $region5: #{tpu_custom_call.1} parent=1 // loop_body
      %s19 = ssub.s32 %s14, 1
      %s20 = ssub.s32 %s14, 2
      %s21 = sadd.s32 %s14, 1
      %s22 = ssub.s32 %s14, %s21
      %p23 = scmp.eq.s32.totalorder %s22, 0
      %s25 = sadd.s32 %s24, 1
      %s26 = scalar_select %p23, %s24, %s25
      %p29 = pneg %p23
      %p30 = scmp.eq.s32.totalorder %s14, 1
      %p31 = por %p29, %p30
      %p32 = scmp.ne.s32.totalorder %s24, %s27
      %p33 = scmp.eq.s32.totalorder %s14, 0
      %p34 = por %p32, %p33
      %p35 = scmp.ne.s32.totalorder %s24, %s27
      %p36 = scmp.eq.s32.totalorder %s19, 1
      %p37 = por %p35, %p36
      %p38 = scmp.ne.s32.totalorder %s27, %s28
      %p39 = scmp.eq.s32.totalorder %s19, 0
      %p40 = por %p38, %p39
      %p41 = scmp.ne.s32.totalorder %s27, %s28
      %p42 = scmp.eq.s32.totalorder %s20, 1
      %p43 = por %p41, %p42
      %p45 = scmp.ne.s32.totalorder %s28, %s44
      %p46 = scmp.eq.s32.totalorder %s20, 0
      %p47 = por %p45, %p46
      %s49 = sadd.s32 %s48, 1
      %p52 = scmp.eq.s32.totalorder %s14, 1
      %p53 = scmp.ne.s32.totalorder %s48, %s50
      %p54 = scmp.eq.s32.totalorder %s14, 0
      %p55 = por %p53, %p54
      %p56 = scmp.ne.s32.totalorder %s48, %s50
      %p57 = scmp.eq.s32.totalorder %s19, 1
      %p58 = por %p56, %p57
      %p59 = scmp.ne.s32.totalorder %s50, %s51
      %p60 = scmp.eq.s32.totalorder %s19, 0
      %p61 = por %p59, %p60
      %p62 = scmp.ne.s32.totalorder %s50, %s51
      %p63 = scmp.eq.s32.totalorder %s20, 1
      %p64 = por %p62, %p63
      %p66 = scmp.ne.s32.totalorder %s51, %s65
      %p67 = scmp.eq.s32.totalorder %s20, 0
      %p68 = por %p66, %p67
      %s70 = sadd.s32 %s69, 1
      %p73 = scmp.eq.s32.totalorder %s14, 1
      %p74 = scmp.ne.s32.totalorder %s69, %s71
      %p75 = scmp.eq.s32.totalorder %s14, 0
      %p76 = por %p74, %p75
      %p77 = scmp.ne.s32.totalorder %s69, %s71
      %p78 = scmp.eq.s32.totalorder %s19, 1
      %p79 = por %p77, %p78
      %p80 = scmp.ne.s32.totalorder %s71, %s72
      %p81 = scmp.eq.s32.totalorder %s19, 0
      %p82 = por %p80, %p81
      %p83 = scmp.ne.s32.totalorder %s71, %s72
      %p84 = scmp.eq.s32.totalorder %s20, 1
      %p85 = por %p83, %p84
      %p87 = scmp.ne.s32.totalorder %s72, %s86
      %p88 = scmp.eq.s32.totalorder %s20, 0
      %p89 = por %p87, %p88
      %s91 = sadd.s32 %s90, 1
      %p94 = scmp.eq.s32.totalorder %s14, 1
      %p95 = scmp.ne.s32.totalorder %s90, %s92
      %p96 = scmp.eq.s32.totalorder %s14, 0
      %p97 = por %p95, %p96
      %p98 = scmp.ne.s32.totalorder %s90, %s92
      %p99 = scmp.eq.s32.totalorder %s19, 1
      %p100 = por %p98, %p99
      %p101 = scmp.ne.s32.totalorder %s92, %s93
      %p102 = scmp.eq.s32.totalorder %s19, 0
      %p103 = por %p101, %p102
      %p104 = scmp.ne.s32.totalorder %s92, %s93
      %p105 = scmp.eq.s32.totalorder %s20, 1
      %p106 = por %p104, %p105
      %p108 = scmp.ne.s32.totalorder %s93, %s107
      %p109 = scmp.eq.s32.totalorder %s20, 0
      %p110 = por %p108, %p109
      %s112 = sadd.s32 %s111, 1
      %p115 = scmp.eq.s32.totalorder %s14, 1
      %p116 = scmp.ne.s32.totalorder %s111, %s113
      %p117 = scmp.eq.s32.totalorder %s14, 0
      %p118 = por %p116, %p117
      %p119 = scmp.ne.s32.totalorder %s111, %s113
      %p120 = scmp.eq.s32.totalorder %s19, 1
      %p121 = por %p119, %p120
      %p122 = scmp.ne.s32.totalorder %s113, %s114
      %p123 = scmp.eq.s32.totalorder %s19, 0
      %p124 = por %p122, %p123
      %p125 = scmp.ne.s32.totalorder %s113, %s114
      %p126 = scmp.eq.s32.totalorder %s20, 1
      %p127 = por %p125, %p126
      %p129 = scmp.ne.s32.totalorder %s114, %s128
      %p130 = scmp.eq.s32.totalorder %s20, 0
      %p131 = por %p129, %p130
      %s132 = ssub.s32 %s14, %s21
      %p133 = scmp.eq.s32.totalorder %s132, 0
      %s135 = sadd.s32 %s134, 1
      %s136 = scalar_select %p133, %s134, %s135
      %p139 = pneg %p133
      %p140 = scmp.eq.s32.totalorder %s14, 1
      %p141 = por %p139, %p140
      %p142 = scmp.ne.s32.totalorder %s134, %s137
      %p143 = scmp.eq.s32.totalorder %s14, 0
      %p144 = por %p142, %p143
      %p145 = scmp.ne.s32.totalorder %s134, %s137
      %p146 = scmp.eq.s32.totalorder %s19, 1
      %p147 = por %p145, %p146
      %p148 = scmp.ne.s32.totalorder %s137, %s138
      %p149 = scmp.eq.s32.totalorder %s19, 0
      %p150 = por %p148, %p149
      %p151 = scmp.ne.s32.totalorder %s137, %s138
      %p152 = scmp.eq.s32.totalorder %s20, 1
      %p153 = por %p151, %p152
      %p155 = scmp.ne.s32.totalorder %s138, %s154
      %p156 = scmp.eq.s32.totalorder %s20, 0
      %p157 = por %p155, %p156
      %p158 = scmp.le.s32.totalorder 1, %s14
      %p159 = scmp.lt.s32.totalorder %s14, 3
      %p160 = pnand %p158, %p159
      %p161 = pneg %p160
      // Predicated region
      $region9: #{tpu_custom_call.1} parent=5 // pred_check
        _
      $region10: #{tpu_custom_call.1} parent=5 // pred_check_branch
        %163 = sbr.rel (%p160) target = $region12
      $region11: #{tpu_custom_call.1} parent=5 // pred_region
        %s164 = ssub.s32 %s14, 1
        // Predicated region
        $region13: #{tpu_custom_call.1} parent=11 // pred_check
          %p165 = pneg %p61
        $region14: #{tpu_custom_call.1} parent=11 // pred_check_branch
          %167 = sbr.rel (%p165) target = $region16
        $region15: #{tpu_custom_call.1} parent=11 // pred_region
          _
        $region16: #{tpu_custom_call.1} parent=11 // pred_fallthru
          _
        // Predicated region
        $region17: #{tpu_custom_call.1} parent=11 // pred_check
          %p168 = pneg %p82
        $region18: #{tpu_custom_call.1} parent=11 // pred_check_branch
          %170 = sbr.rel (%p168) target = $region20
        $region19: #{tpu_custom_call.1} parent=11 // pred_region
          _
        $region20: #{tpu_custom_call.1} parent=11 // pred_fallthru
          _
        // Predicated region
        $region21: #{tpu_custom_call.1} parent=11 // pred_check
          %p171 = pneg %p103
        $region22: #{tpu_custom_call.1} parent=11 // pred_check_branch
          %173 = sbr.rel (%p171) target = $region24
        $region23: #{tpu_custom_call.1} parent=11 // pred_region
          _
        $region24: #{tpu_custom_call.1} parent=11 // pred_fallthru
          _
        // Predicated region
        $region25: #{tpu_custom_call.1} parent=11 // pred_check
          %p174 = pneg %p124
        $region26: #{tpu_custom_call.1} parent=11 // pred_check_branch
          %176 = sbr.rel (%p174) target = $region28
        $region27: #{tpu_custom_call.1} parent=11 // pred_region
          _
        $region28: #{tpu_custom_call.1} parent=11 // pred_fallthru
          _
      $region12: #{tpu_custom_call.1} parent=5 // pred_fallthru
        _
      %p177 = scmp.lt.s32.totalorder %s14, 2
      // Predicated region
      $region29: #{tpu_custom_call.1} parent=5 // pred_check
        %p178 = pneg %p177
      $region30: #{tpu_custom_call.1} parent=5 // pred_check_branch
        %180 = sbr.rel (%p178) target = $region32
      $region31: #{tpu_custom_call.1} parent=5 // pred_region
        // Predicated region
        $region33: #{tpu_custom_call.1} parent=31 // pred_check
          %p181 = pneg %p34
        $region34: #{tpu_custom_call.1} parent=31 // pred_check_branch
          %183 = sbr.rel (%p181) target = $region36
        $region35: #{tpu_custom_call.1} parent=31 // pred_region
          %s184 = smul.u32 32, %s14
          %p185 = scmp.lt.s32.totalorder %s184, 63
          %s186 = scalar_select %p185, %s184, 63
          %s187 = smul.addr %s186, 8
          %s188 = scalar_lea.vmem %s0, %s187
          %s189 = smul.u32 32, %s14
        $region36: #{tpu_custom_call.1} parent=31 // pred_fallthru
          _
      $region32: #{tpu_custom_call.1} parent=5 // pred_fallthru
        _
      %p190 = scmp.le.s32.totalorder 1, %s14
      %p191 = scmp.lt.s32.totalorder %s14, 3
      %p192 = pnand %p190, %p191
      %p193 = pneg %p192
      // Predicated region
      $region37: #{tpu_custom_call.1} parent=5 // pred_check
        _
      $region38: #{tpu_custom_call.1} parent=5 // pred_check_branch
        %195 = sbr.rel (%p192) target = $region40
      $region39: #{tpu_custom_call.1} parent=5 // pred_region
        %s196 = ssub.s32 %s14, 1
        %s197 = smul.u32 32, %s19
        %p198 = scmp.lt.s32.totalorder %s197, 63
        %s199 = scalar_select %p198, %s197, 63
        %s200 = smul.addr %s199, 8
        %s201 = scalar_lea.vmem %s0, %s200
        %p202 = pneg %p40
        %p203 = pneg %p37
        %p204 = pneg %p61
        %p205 = pneg %p58
        %p206 = pneg %p82
        %p207 = pneg %p79
        %p208 = pneg %p103
        %p209 = pneg %p100
        %p210 = pneg %p124
        %p211 = pneg %p121
        %p212 = pneg %p150
        %p213 = pneg %p147
        %s214 = sand.u32 %s137, 1
        %s215 = scalar_lea.sflag [#allocation3], %s214
        %s216 = sand.u32 %s137, 1
        %s217 = smul.addr %s216, 256
        %s218 = scalar_lea.vmem [#allocation2], %s217
        %s219 = smul.u32 32, %s19
        %p220 = scmp.lt.s32.totalorder %s219, 63
        %s221 = scalar_select %p220, %s219, 63
        %s222 = smul.addr %s221, 8
        %s223 = scalar_lea.vmem %s0, %s222
        %s224 = smul.u32 32, %s19
        %s225 = smul.u32 32, %s19
        %v227 = vld [vmem:[%s223] sm:$0xff]
        %v228 = vld [vmem:[%s223 + $0x8] sm:$0xff]
        %v229 = vld [vmem:[%s223 + $0x10] sm:$0xff]
        %v230 = vld [vmem:[%s223 + $0x18] sm:$0xff]
        %v231 = vld [vmem:[%s223 + $0x20] sm:$0xff]
        %v232 = vld [vmem:[%s223 + $0x28] sm:$0xff]
        %v233 = vld [vmem:[%s223 + $0x30] sm:$0xff]
        %v234 = vld [vmem:[%s223 + $0x38] sm:$0xff]
        %v235 = vld [vmem:[%s223 + $0x40] sm:$0xff]
        %v236 = vld [vmem:[%s223 + $0x48] sm:$0xff]
        %v237 = vld [vmem:[%s223 + $0x50] sm:$0xff]
        %v238 = vld [vmem:[%s223 + $0x58] sm:$0xff]
        %v239 = vld [vmem:[%s223 + $0x60] sm:$0xff]
        %v240 = vld [vmem:[%s223 + $0x68] sm:$0xff]
        %v241 = vld [vmem:[%s223 + $0x70] sm:$0xff]
        %v242 = vld [vmem:[%s223 + $0x78] sm:$0xff]
        %v243 = vld [vmem:[%s223 + $0x80] sm:$0xff]
        %v244 = vld [vmem:[%s223 + $0x88] sm:$0xff]
        %v245 = vld [vmem:[%s223 + $0x90] sm:$0xff]
        %v246 = vld [vmem:[%s223 + $0x98] sm:$0xff]
        %v247 = vld [vmem:[%s223 + $0xa0] sm:$0xff]
        %v248 = vld [vmem:[%s223 + $0xa8] sm:$0xff]
        %v249 = vld [vmem:[%s223 + $0xb0] sm:$0xff]
        %v250 = vld [vmem:[%s223 + $0xb8] sm:$0xff]
        %v251 = vld [vmem:[%s223 + $0xc0] sm:$0xff]
        %v252 = vld [vmem:[%s223 + $0xc8] sm:$0xff]
        %v253 = vld [vmem:[%s223 + $0xd0] sm:$0xff]
        %v254 = vld [vmem:[%s223 + $0xd8] sm:$0xff]
        %v255 = vld [vmem:[%s223 + $0xe0] sm:$0xff]
        %v256 = vld [vmem:[%s223 + $0xe8] sm:$0xff]
        %v257 = vld [vmem:[%s223 + $0xf0] sm:$0xff]
        %v258 = vld [vmem:[%s223 + $0xf8] sm:$0xff]
        %v259 = vmul.f32 %v227, %v227
        %v260 = vmul.f32 %v228, %v228
        %v261 = vmul.f32 %v229, %v229
        %v262 = vmul.f32 %v230, %v230
        %v263 = vmul.f32 %v231, %v231
        %v264 = vmul.f32 %v232, %v232
        %v265 = vmul.f32 %v233, %v233
        %v266 = vmul.f32 %v234, %v234
        %v267 = vmul.f32 %v235, %v235
        %v268 = vmul.f32 %v236, %v236
        %v269 = vmul.f32 %v237, %v237
        %v270 = vmul.f32 %v238, %v238
        %v271 = vmul.f32 %v239, %v239
        %v272 = vmul.f32 %v240, %v240
        %v273 = vmul.f32 %v241, %v241
        %v274 = vmul.f32 %v242, %v242
        %v275 = vmul.f32 %v243, %v243
        %v276 = vmul.f32 %v244, %v244
        %v277 = vmul.f32 %v245, %v245
        %v278 = vmul.f32 %v246, %v246
        %v279 = vmul.f32 %v247, %v247
        %v280 = vmul.f32 %v248, %v248
        %v281 = vmul.f32 %v249, %v249
        %v282 = vmul.f32 %v250, %v250
        %v283 = vmul.f32 %v251, %v251
        %v284 = vmul.f32 %v252, %v252
        %v285 = vmul.f32 %v253, %v253
        %v286 = vmul.f32 %v254, %v254
        %v287 = vmul.f32 %v255, %v255
        %v288 = vmul.f32 %v256, %v256
        %v289 = vmul.f32 %v257, %v257
        %v290 = vmul.f32 %v258, %v258
        %vm291 = vcmask 130048
        %v292 = vsel %vm291, %v259, 0.0
        %293 = vadd.xlane.f32.xlu0 %v292
        %v294 = vpop.xlane.xlu0 %293
        %v295 = vsel %vm291, %v260, 0.0
        %296 = vadd.xlane.f32.xlu0 %v295
        %v297 = vpop.xlane.xlu0 %296
        %v298 = vsel %vm291, %v261, 0.0
        %299 = vadd.xlane.f32.xlu0 %v298
        %v300 = vpop.xlane.xlu0 %299
        %v301 = vsel %vm291, %v262, 0.0
        %302 = vadd.xlane.f32.xlu0 %v301
        %v303 = vpop.xlane.xlu0 %302
        %v304 = vsel %vm291, %v263, 0.0
        %305 = vadd.xlane.f32.xlu0 %v304
        %v306 = vpop.xlane.xlu0 %305
        %v307 = vsel %vm291, %v264, 0.0
        %308 = vadd.xlane.f32.xlu0 %v307
        %v309 = vpop.xlane.xlu0 %308
        %v310 = vsel %vm291, %v265, 0.0
        %311 = vadd.xlane.f32.xlu0 %v310
        %v312 = vpop.xlane.xlu0 %311
        %v313 = vsel %vm291, %v266, 0.0
        %314 = vadd.xlane.f32.xlu0 %v313
        %v315 = vpop.xlane.xlu0 %314
        %v316 = vsel %vm291, %v267, 0.0
        %317 = vadd.xlane.f32.xlu0 %v316
        %v318 = vpop.xlane.xlu0 %317
        %v319 = vsel %vm291, %v268, 0.0
        %320 = vadd.xlane.f32.xlu0 %v319
        %v321 = vpop.xlane.xlu0 %320
        %v322 = vsel %vm291, %v269, 0.0
        %323 = vadd.xlane.f32.xlu0 %v322
        %v324 = vpop.xlane.xlu0 %323
        %v325 = vsel %vm291, %v270, 0.0
        %326 = vadd.xlane.f32.xlu0 %v325
        %v327 = vpop.xlane.xlu0 %326
        %v328 = vsel %vm291, %v271, 0.0
        %329 = vadd.xlane.f32.xlu0 %v328
        %v330 = vpop.xlane.xlu0 %329
        %v331 = vsel %vm291, %v272, 0.0
        %332 = vadd.xlane.f32.xlu0 %v331
        %v333 = vpop.xlane.xlu0 %332
        %v334 = vsel %vm291, %v273, 0.0
        %335 = vadd.xlane.f32.xlu0 %v334
        %v336 = vpop.xlane.xlu0 %335
        %v337 = vsel %vm291, %v274, 0.0
        %338 = vadd.xlane.f32.xlu0 %v337
        %v339 = vpop.xlane.xlu0 %338
        %v340 = vsel %vm291, %v275, 0.0
        %341 = vadd.xlane.f32.xlu0 %v340
        %v342 = vpop.xlane.xlu0 %341
        %v343 = vsel %vm291, %v276, 0.0
        %344 = vadd.xlane.f32.xlu0 %v343
        %v345 = vpop.xlane.xlu0 %344
        %v346 = vsel %vm291, %v277, 0.0
        %347 = vadd.xlane.f32.xlu0 %v346
        %v348 = vpop.xlane.xlu0 %347
        %v349 = vsel %vm291, %v278, 0.0
        %350 = vadd.xlane.f32.xlu0 %v349
        %v351 = vpop.xlane.xlu0 %350
        %v352 = vsel %vm291, %v279, 0.0
        %353 = vadd.xlane.f32.xlu0 %v352
        %v354 = vpop.xlane.xlu0 %353
        %v355 = vsel %vm291, %v280, 0.0
        %356 = vadd.xlane.f32.xlu0 %v355
        %v357 = vpop.xlane.xlu0 %356
        %v358 = vsel %vm291, %v281, 0.0
        %359 = vadd.xlane.f32.xlu0 %v358
        %v360 = vpop.xlane.xlu0 %359
        %v361 = vsel %vm291, %v282, 0.0
        %362 = vadd.xlane.f32.xlu0 %v361
        %v363 = vpop.xlane.xlu0 %362
        %v364 = vsel %vm291, %v283, 0.0
        %365 = vadd.xlane.f32.xlu0 %v364
        %v366 = vpop.xlane.xlu0 %365
        %v367 = vsel %vm291, %v284, 0.0
        %368 = vadd.xlane.f32.xlu0 %v367
        %v369 = vpop.xlane.xlu0 %368
        %v370 = vsel %vm291, %v285, 0.0
        %371 = vadd.xlane.f32.xlu0 %v370
        %v372 = vpop.xlane.xlu0 %371
        %v373 = vsel %vm291, %v286, 0.0
        %374 = vadd.xlane.f32.xlu0 %v373
        %v375 = vpop.xlane.xlu0 %374
        %v376 = vsel %vm291, %v287, 0.0
        %377 = vadd.xlane.f32.xlu0 %v376
        %v378 = vpop.xlane.xlu0 %377
        %v379 = vsel %vm291, %v288, 0.0
        %380 = vadd.xlane.f32.xlu0 %v379
        %v381 = vpop.xlane.xlu0 %380
        %v382 = vsel %vm291, %v289, 0.0
        %383 = vadd.xlane.f32.xlu0 %v382
        %v384 = vpop.xlane.xlu0 %383
        %v385 = vsel %vm291, %v290, 0.0
        %386 = vadd.xlane.f32.xlu0 %v385
        %v387 = vpop.xlane.xlu0 %386
        %v388 = vmul.f32 %v294, 0.5
        %v389 = vmul.f32 %v297, 0.5
        %v390 = vmul.f32 %v300, 0.5
        %v391 = vmul.f32 %v303, 0.5
        %v392 = vmul.f32 %v306, 0.5
        %v393 = vmul.f32 %v309, 0.5
        %v394 = vmul.f32 %v312, 0.5
        %v395 = vmul.f32 %v315, 0.5
        %v396 = vmul.f32 %v318, 0.5
        %v397 = vmul.f32 %v321, 0.5
        %v398 = vmul.f32 %v324, 0.5
        %v399 = vmul.f32 %v327, 0.5
        %v400 = vmul.f32 %v330, 0.5
        %v401 = vmul.f32 %v333, 0.5
        %v402 = vmul.f32 %v336, 0.5
        %v403 = vmul.f32 %v339, 0.5
        %v404 = vmul.f32 %v342, 0.5
        %v405 = vmul.f32 %v345, 0.5
        %v406 = vmul.f32 %v348, 0.5
        %v407 = vmul.f32 %v351, 0.5
        %v408 = vmul.f32 %v354, 0.5
        %v409 = vmul.f32 %v357, 0.5
        %v410 = vmul.f32 %v360, 0.5
        %v411 = vmul.f32 %v363, 0.5
        %v412 = vmul.f32 %v366, 0.5
        %v413 = vmul.f32 %v369, 0.5
        %v414 = vmul.f32 %v372, 0.5
        %v415 = vmul.f32 %v375, 0.5
        %v416 = vmul.f32 %v378, 0.5
        %v417 = vmul.f32 %v381, 0.5
        %v418 = vmul.f32 %v384, 0.5
        %v419 = vmul.f32 %v387, 0.5
        %v420 = vpack.c.bf16 %v228, %v227
        %v421 = vpack.c.bf16 %v230, %v229
        %v422 = vpack.c.bf16 %v232, %v231
        %v423 = vpack.c.bf16 %v234, %v233
        %v424 = vpack.c.bf16 %v236, %v235
        %v425 = vpack.c.bf16 %v238, %v237
        %v426 = vpack.c.bf16 %v240, %v239
        %v427 = vpack.c.bf16 %v242, %v241
        %v428 = vpack.c.bf16 %v244, %v243
        %v429 = vpack.c.bf16 %v246, %v245
        %v430 = vpack.c.bf16 %v248, %v247
        %v431 = vpack.c.bf16 %v250, %v249
        %v432 = vpack.c.bf16 %v252, %v251
        %v433 = vpack.c.bf16 %v254, %v253
        %v434 = vpack.c.bf16 %v256, %v255
        %v435 = vpack.c.bf16 %v258, %v257
        %v436 = vld [vmem:[%s1] sm:$0xff]
        %v437 = vld [vmem:[%s1 + $0x8] sm:$0xff]
        %v440 = vunpack.c.l.b16 %v436
        %v441 = vunpack.c.h.b16 %v436
        %v442 = vunpack.c.l.b16 %v437
        %v443 = vunpack.c.h.b16 %v437
        %v444 = vpack.c.b16 %v442, %v440
        %v445 = vpack.c.b16 %v443, %v441
        %v449 = vsel %vm291, %v420, 0
        %v452 = vsel %vm291, %v421, 0
        %v455 = vsel %vm291, %v422, 0
        %v458 = vsel %vm291, %v423, 0
        %v461 = vsel %vm291, %v424, 0
        %v464 = vsel %vm291, %v425, 0
        %v467 = vsel %vm291, %v426, 0
        %v470 = vsel %vm291, %v427, 0
        %v473 = vsel %vm291, %v428, 0
        %v476 = vsel %vm291, %v429, 0
        %v479 = vsel %vm291, %v430, 0
        %v482 = vsel %vm291, %v431, 0
        %v485 = vsel %vm291, %v432, 0
        %v488 = vsel %vm291, %v433, 0
        %v491 = vsel %vm291, %v434, 0
        %v494 = vsel %vm291, %v435, 0
        %496 = vmatprep.subr.bf16.mxu0 0
        %497 = vmatpush1.bf16.msra.mxu0 0
        %498 = vmatprep.subr.bf16.mxu0 0
        %499 = vmatpush1.bf16.msra.mxu0 0
        %500 = vmatprep.subr.bf16.mxu0 0
        %501 = vmatpush1.bf16.msra.mxu0 0
        %502 = vmatprep.subr.bf16.mxu0 0
        %503 = vmatpush1.bf16.msra.mxu0 0
        %504 = vmatprep.subr.bf16.mxu0 0
        %505 = vmatpush1.bf16.msra.mxu0 0
        %506 = vmatprep.subr.bf16.mxu0 0
        %507 = vmatpush1.bf16.msra.mxu0 0
        %508 = vmatprep.subr.bf16.mxu0 0
        %509 = vmatpush1.bf16.msra.mxu0 0
        %510 = vmatprep.subr.bf16.mxu0 %v445
        %511 = vmatpush1.bf16.msra.mxu0 %v444
        %512 = vmatprep.subr.bf16.mxu0 0
        %513 = vmatpush2.bf16.msra.mxu0 0
        %514 = vmatprep.subr.bf16.mxu0 0
        %515 = vmatpush2.bf16.msra.mxu0 0
        %516 = vmatprep.subr.bf16.mxu0 0
        %517 = vmatpush2.bf16.msra.mxu0 0
        %518 = vmatprep.subr.bf16.mxu0 0
        %519 = vmatpush2.bf16.msra.mxu0 0
        %520 = vmatprep.subr.bf16.mxu0 0
        %521 = vmatpush2.bf16.msra.mxu0 0
        %522 = vmatprep.subr.bf16.mxu0 0
        %523 = vmatpush2.bf16.msra.mxu0 0
        %524 = vmatprep.subr.bf16.mxu0 0
        %525 = vmatpush2.bf16.msra.mxu0 0
        %526 = vmatprep.subr.bf16.mxu0 0
        %527 = vmatpush2.bf16.msra.mxu0 0
        %528 = vmatprep.mubr.bf16.mxu0 0
        %529 = vmatmul.mubr.bf16.gmra.mxu0 %v449
        %v530 = vpop.f32.mrf.mxu0
        %v531 = vadd.f32 0.0, %v530
        %v532 = vpop.f32.mrf.mxu0
        %v533 = vadd.f32 0.0, %v532
        %v534 = vpop.f32.mrf.mxu0
        %v535 = vadd.f32 0.0, %v534
        %v536 = vpop.f32.mrf.mxu0
        %v537 = vadd.f32 0.0, %v536
        %538 = vmatprep.mubr.bf16.mxu0 0
        %539 = vmatmul.mubr.bf16.gmra.mxu0 %v452
        %v540 = vpop.f32.mrf.mxu0
        %v541 = vadd.f32 0.0, %v540
        %v542 = vpop.f32.mrf.mxu0
        %v543 = vadd.f32 0.0, %v542
        %v544 = vpop.f32.mrf.mxu0
        %v545 = vadd.f32 0.0, %v544
        %v546 = vpop.f32.mrf.mxu0
        %v547 = vadd.f32 0.0, %v546
        %548 = vmatprep.mubr.bf16.mxu0 0
        %549 = vmatmul.mubr.bf16.gmra.mxu0 %v455
        %v550 = vpop.f32.mrf.mxu0
        %v551 = vadd.f32 0.0, %v550
        %v552 = vpop.f32.mrf.mxu0
        %v553 = vadd.f32 0.0, %v552
        %v554 = vpop.f32.mrf.mxu0
        %v555 = vadd.f32 0.0, %v554
        %v556 = vpop.f32.mrf.mxu0
        %v557 = vadd.f32 0.0, %v556
        %558 = vmatprep.mubr.bf16.mxu0 0
        %559 = vmatmul.mubr.bf16.gmra.mxu0 %v458
        %v560 = vpop.f32.mrf.mxu0
        %v561 = vadd.f32 0.0, %v560
        %v562 = vpop.f32.mrf.mxu0
        %v563 = vadd.f32 0.0, %v562
        %v564 = vpop.f32.mrf.mxu0
        %v565 = vadd.f32 0.0, %v564
        %v566 = vpop.f32.mrf.mxu0
        %v567 = vadd.f32 0.0, %v566
        %568 = vmatprep.mubr.bf16.mxu0 0
        %569 = vmatmul.mubr.bf16.gmra.mxu0 %v461
        %v570 = vpop.f32.mrf.mxu0
        %v571 = vadd.f32 0.0, %v570
        %v572 = vpop.f32.mrf.mxu0
        %v573 = vadd.f32 0.0, %v572
        %v574 = vpop.f32.mrf.mxu0
        %v575 = vadd.f32 0.0, %v574
        %v576 = vpop.f32.mrf.mxu0
        %v577 = vadd.f32 0.0, %v576
        %578 = vmatprep.mubr.bf16.mxu0 0
        %579 = vmatmul.mubr.bf16.gmra.mxu0 %v464
        %v580 = vpop.f32.mrf.mxu0
        %v581 = vadd.f32 0.0, %v580
        %v582 = vpop.f32.mrf.mxu0
        %v583 = vadd.f32 0.0, %v582
        %v584 = vpop.f32.mrf.mxu0
        %v585 = vadd.f32 0.0, %v584
        %v586 = vpop.f32.mrf.mxu0
        %v587 = vadd.f32 0.0, %v586
        %588 = vmatprep.mubr.bf16.mxu0 0
        %589 = vmatmul.mubr.bf16.gmra.mxu0 %v467
        %v590 = vpop.f32.mrf.mxu0
        %v591 = vadd.f32 0.0, %v590
        %v592 = vpop.f32.mrf.mxu0
        %v593 = vadd.f32 0.0, %v592
        %v594 = vpop.f32.mrf.mxu0
        %v595 = vadd.f32 0.0, %v594
        %v596 = vpop.f32.mrf.mxu0
        %v597 = vadd.f32 0.0, %v596
        %598 = vmatprep.mubr.bf16.mxu0 0
        %599 = vmatmul.mubr.bf16.gmra.mxu0 %v470
        %v600 = vpop.f32.mrf.mxu0
        %v601 = vadd.f32 0.0, %v600
        %v602 = vpop.f32.mrf.mxu0
        %v603 = vadd.f32 0.0, %v602
        %v604 = vpop.f32.mrf.mxu0
        %v605 = vadd.f32 0.0, %v604
        %v606 = vpop.f32.mrf.mxu0
        %v607 = vadd.f32 0.0, %v606
        %608 = vmatprep.mubr.bf16.mxu0 0
        %609 = vmatmul.mubr.bf16.gmra.mxu0 %v473
        %v610 = vpop.f32.mrf.mxu0
        %v611 = vadd.f32 0.0, %v610
        %v612 = vpop.f32.mrf.mxu0
        %v613 = vadd.f32 0.0, %v612
        %v614 = vpop.f32.mrf.mxu0
        %v615 = vadd.f32 0.0, %v614
        %v616 = vpop.f32.mrf.mxu0
        %v617 = vadd.f32 0.0, %v616
        %618 = vmatprep.mubr.bf16.mxu0 0
        %619 = vmatmul.mubr.bf16.gmra.mxu0 %v476
        %v620 = vpop.f32.mrf.mxu0
        %v621 = vadd.f32 0.0, %v620
        %v622 = vpop.f32.mrf.mxu0
        %v623 = vadd.f32 0.0, %v622
        %v624 = vpop.f32.mrf.mxu0
        %v625 = vadd.f32 0.0, %v624
        %v626 = vpop.f32.mrf.mxu0
        %v627 = vadd.f32 0.0, %v626
        %628 = vmatprep.mubr.bf16.mxu0 0
        %629 = vmatmul.mubr.bf16.gmra.mxu0 %v479
        %v630 = vpop.f32.mrf.mxu0
        %v631 = vadd.f32 0.0, %v630
        %v632 = vpop.f32.mrf.mxu0
        %v633 = vadd.f32 0.0, %v632
        %v634 = vpop.f32.mrf.mxu0
        %v635 = vadd.f32 0.0, %v634
        %v636 = vpop.f32.mrf.mxu0
        %v637 = vadd.f32 0.0, %v636
        %638 = vmatprep.mubr.bf16.mxu0 0
        %639 = vmatmul.mubr.bf16.gmra.mxu0 %v482
        %v640 = vpop.f32.mrf.mxu0
        %v641 = vadd.f32 0.0, %v640
        %v642 = vpop.f32.mrf.mxu0
        %v643 = vadd.f32 0.0, %v642
        %v644 = vpop.f32.mrf.mxu0
        %v645 = vadd.f32 0.0, %v644
        %v646 = vpop.f32.mrf.mxu0
        %v647 = vadd.f32 0.0, %v646
        %648 = vmatprep.mubr.bf16.mxu0 0
        %649 = vmatmul.mubr.bf16.gmra.mxu0 %v485
        %v650 = vpop.f32.mrf.mxu0
        %v651 = vadd.f32 0.0, %v650
        %v652 = vpop.f32.mrf.mxu0
        %v653 = vadd.f32 0.0, %v652
        %v654 = vpop.f32.mrf.mxu0
        %v655 = vadd.f32 0.0, %v654
        %v656 = vpop.f32.mrf.mxu0
        %v657 = vadd.f32 0.0, %v656
        %658 = vmatprep.mubr.bf16.mxu0 0
        %659 = vmatmul.mubr.bf16.gmra.mxu0 %v488
        %v660 = vpop.f32.mrf.mxu0
        %v661 = vadd.f32 0.0, %v660
        %v662 = vpop.f32.mrf.mxu0
        %v663 = vadd.f32 0.0, %v662
        %v664 = vpop.f32.mrf.mxu0
        %v665 = vadd.f32 0.0, %v664
        %v666 = vpop.f32.mrf.mxu0
        %v667 = vadd.f32 0.0, %v666
        %668 = vmatprep.mubr.bf16.mxu0 0
        %669 = vmatmul.mubr.bf16.gmra.mxu0 %v491
        %v670 = vpop.f32.mrf.mxu0
        %v671 = vadd.f32 0.0, %v670
        %v672 = vpop.f32.mrf.mxu0
        %v673 = vadd.f32 0.0, %v672
        %v674 = vpop.f32.mrf.mxu0
        %v675 = vadd.f32 0.0, %v674
        %v676 = vpop.f32.mrf.mxu0
        %v677 = vadd.f32 0.0, %v676
        %678 = vmatprep.mubr.bf16.mxu0 0
        %679 = vmatmul.mubr.bf16.gmra.mxu0 %v494
        %v680 = vpop.f32.mrf.mxu0
        %v681 = vadd.f32 0.0, %v680
        %v682 = vpop.f32.mrf.mxu0
        %v683 = vadd.f32 0.0, %v682
        %v684 = vpop.f32.mrf.mxu0
        %v685 = vadd.f32 0.0, %v684
        %v686 = vpop.f32.mrf.mxu0
        %v687 = vadd.f32 0.0, %v686
        %688 = vdwg.mxu0
        %v689 = vld [vmem:[%s2] sm:$0x3]
        %v691 = vlaneseq
        %v692 = vshrl.u32 %v691, 7
        %v693 = vsub.s32 0, %v692
        %v694 = vrot.slane %v689, %v693
        %v695 = vlaneseq
        %v696 = vshrl.u32 %v695, 7
        %v697 = vsub.s32 1, %v696
        %v698 = vrot.slane %v689, %v697
        %v701 = vmul.f32 %v388, %v694
        %v702 = vmul.f32 %v388, %v698
        %v703 = vmul.f32 %v389, %v694
        %v704 = vmul.f32 %v389, %v698
        %v705 = vmul.f32 %v390, %v694
        %v706 = vmul.f32 %v390, %v698
        %v707 = vmul.f32 %v391, %v694
        %v708 = vmul.f32 %v391, %v698
        %v709 = vmul.f32 %v392, %v694
        %v710 = vmul.f32 %v392, %v698
        %v711 = vmul.f32 %v393, %v694
        %v712 = vmul.f32 %v393, %v698
        %v713 = vmul.f32 %v394, %v694
        %v714 = vmul.f32 %v394, %v698
        %v715 = vmul.f32 %v395, %v694
        %v716 = vmul.f32 %v395, %v698
        %v717 = vmul.f32 %v396, %v694
        %v718 = vmul.f32 %v396, %v698
        %v719 = vmul.f32 %v397, %v694
        %v720 = vmul.f32 %v397, %v698
        %v721 = vmul.f32 %v398, %v694
        %v722 = vmul.f32 %v398, %v698
        %v723 = vmul.f32 %v399, %v694
        %v724 = vmul.f32 %v399, %v698
        %v725 = vmul.f32 %v400, %v694
        %v726 = vmul.f32 %v400, %v698
        %v727 = vmul.f32 %v401, %v694
        %v728 = vmul.f32 %v401, %v698
        %v729 = vmul.f32 %v402, %v694
        %v730 = vmul.f32 %v402, %v698
        %v731 = vmul.f32 %v403, %v694
        %v732 = vmul.f32 %v403, %v698
        %v733 = vmul.f32 %v404, %v694
        %v734 = vmul.f32 %v404, %v698
        %v735 = vmul.f32 %v405, %v694
        %v736 = vmul.f32 %v405, %v698
        %v737 = vmul.f32 %v406, %v694
        %v738 = vmul.f32 %v406, %v698
        %v739 = vmul.f32 %v407, %v694
        %v740 = vmul.f32 %v407, %v698
        %v741 = vmul.f32 %v408, %v694
        %v742 = vmul.f32 %v408, %v698
        %v743 = vmul.f32 %v409, %v694
        %v744 = vmul.f32 %v409, %v698
        %v745 = vmul.f32 %v410, %v694
        %v746 = vmul.f32 %v410, %v698
        %v747 = vmul.f32 %v411, %v694
        %v748 = vmul.f32 %v411, %v698
        %v749 = vmul.f32 %v412, %v694
        %v750 = vmul.f32 %v412, %v698
        %v751 = vmul.f32 %v413, %v694
        %v752 = vmul.f32 %v413, %v698
        %v753 = vmul.f32 %v414, %v694
        %v754 = vmul.f32 %v414, %v698
        %v755 = vmul.f32 %v415, %v694
        %v756 = vmul.f32 %v415, %v698
        %v757 = vmul.f32 %v416, %v694
        %v758 = vmul.f32 %v416, %v698
        %v759 = vmul.f32 %v417, %v694
        %v760 = vmul.f32 %v417, %v698
        %v761 = vmul.f32 %v418, %v694
        %v762 = vmul.f32 %v418, %v698
        %v763 = vmul.f32 %v419, %v694
        %v764 = vmul.f32 %v419, %v698
        %v765 = vld [vmem:[%s3] sm:$0x3]
        %v767 = vlaneseq
        %v768 = vshrl.u32 %v767, 7
        %v769 = vsub.s32 0, %v768
        %v770 = vrot.slane %v765, %v769
        %v771 = vlaneseq
        %v772 = vshrl.u32 %v771, 7
        %v773 = vsub.s32 1, %v772
        %v774 = vrot.slane %v765, %v773
        %v777 = vadd.f32 %v701, %v770
        %v778 = vadd.f32 %v702, %v774
        %v779 = vadd.f32 %v703, %v770
        %v780 = vadd.f32 %v704, %v774
        %v781 = vadd.f32 %v705, %v770
        %v782 = vadd.f32 %v706, %v774
        %v783 = vadd.f32 %v707, %v770
        %v784 = vadd.f32 %v708, %v774
        %v785 = vadd.f32 %v709, %v770
        %v786 = vadd.f32 %v710, %v774
        %v787 = vadd.f32 %v711, %v770
        %v788 = vadd.f32 %v712, %v774
        %v789 = vadd.f32 %v713, %v770
        %v790 = vadd.f32 %v714, %v774
        %v791 = vadd.f32 %v715, %v770
        %v792 = vadd.f32 %v716, %v774
        %v793 = vadd.f32 %v717, %v770
        %v794 = vadd.f32 %v718, %v774
        %v795 = vadd.f32 %v719, %v770
        %v796 = vadd.f32 %v720, %v774
        %v797 = vadd.f32 %v721, %v770
        %v798 = vadd.f32 %v722, %v774
        %v799 = vadd.f32 %v723, %v770
        %v800 = vadd.f32 %v724, %v774
        %v801 = vadd.f32 %v725, %v770
        %v802 = vadd.f32 %v726, %v774
        %v803 = vadd.f32 %v727, %v770
        %v804 = vadd.f32 %v728, %v774
        %v805 = vadd.f32 %v729, %v770
        %v806 = vadd.f32 %v730, %v774
        %v807 = vadd.f32 %v731, %v770
        %v808 = vadd.f32 %v732, %v774
        %v809 = vadd.f32 %v733, %v770
        %v810 = vadd.f32 %v734, %v774
        %v811 = vadd.f32 %v735, %v770
        %v812 = vadd.f32 %v736, %v774
        %v813 = vadd.f32 %v737, %v770
        %v814 = vadd.f32 %v738, %v774
        %v815 = vadd.f32 %v739, %v770
        %v816 = vadd.f32 %v740, %v774
        %v817 = vadd.f32 %v741, %v770
        %v818 = vadd.f32 %v742, %v774
        %v819 = vadd.f32 %v743, %v770
        %v820 = vadd.f32 %v744, %v774
        %v821 = vadd.f32 %v745, %v770
        %v822 = vadd.f32 %v746, %v774
        %v823 = vadd.f32 %v747, %v770
        %v824 = vadd.f32 %v748, %v774
        %v825 = vadd.f32 %v749, %v770
        %v826 = vadd.f32 %v750, %v774
        %v827 = vadd.f32 %v751, %v770
        %v828 = vadd.f32 %v752, %v774
        %v829 = vadd.f32 %v753, %v770
        %v830 = vadd.f32 %v754, %v774
        %v831 = vadd.f32 %v755, %v770
        %v832 = vadd.f32 %v756, %v774
        %v833 = vadd.f32 %v757, %v770
        %v834 = vadd.f32 %v758, %v774
        %v835 = vadd.f32 %v759, %v770
        %v836 = vadd.f32 %v760, %v774
        %v837 = vadd.f32 %v761, %v770
        %v838 = vadd.f32 %v762, %v774
        %v839 = vadd.f32 %v763, %v770
        %v840 = vadd.f32 %v764, %v774
        %v841 = vsub.f32 %v531, %v777
        %v842 = vsub.f32 %v533, %v778
        %v843 = vsub.f32 %v535, %v779
        %v844 = vsub.f32 %v537, %v780
        %v845 = vsub.f32 %v541, %v781
        %v846 = vsub.f32 %v543, %v782
        %v847 = vsub.f32 %v545, %v783
        %v848 = vsub.f32 %v547, %v784
        %v849 = vsub.f32 %v551, %v785
        %v850 = vsub.f32 %v553, %v786
        %v851 = vsub.f32 %v555, %v787
        %v852 = vsub.f32 %v557, %v788
        %v853 = vsub.f32 %v561, %v789
        %v854 = vsub.f32 %v563, %v790
        %v855 = vsub.f32 %v565, %v791
        %v856 = vsub.f32 %v567, %v792
        %v857 = vsub.f32 %v571, %v793
        %v858 = vsub.f32 %v573, %v794
        %v859 = vsub.f32 %v575, %v795
        %v860 = vsub.f32 %v577, %v796
        %v861 = vsub.f32 %v581, %v797
        %v862 = vsub.f32 %v583, %v798
        %v863 = vsub.f32 %v585, %v799
        %v864 = vsub.f32 %v587, %v800
        %v865 = vsub.f32 %v591, %v801
        %v866 = vsub.f32 %v593, %v802
        %v867 = vsub.f32 %v595, %v803
        %v868 = vsub.f32 %v597, %v804
        %v869 = vsub.f32 %v601, %v805
        %v870 = vsub.f32 %v603, %v806
        %v871 = vsub.f32 %v605, %v807
        %v872 = vsub.f32 %v607, %v808
        %v873 = vsub.f32 %v611, %v809
        %v874 = vsub.f32 %v613, %v810
        %v875 = vsub.f32 %v615, %v811
        %v876 = vsub.f32 %v617, %v812
        %v877 = vsub.f32 %v621, %v813
        %v878 = vsub.f32 %v623, %v814
        %v879 = vsub.f32 %v625, %v815
        %v880 = vsub.f32 %v627, %v816
        %v881 = vsub.f32 %v631, %v817
        %v882 = vsub.f32 %v633, %v818
        %v883 = vsub.f32 %v635, %v819
        %v884 = vsub.f32 %v637, %v820
        %v885 = vsub.f32 %v641, %v821
        %v886 = vsub.f32 %v643, %v822
        %v887 = vsub.f32 %v645, %v823
        %v888 = vsub.f32 %v647, %v824
        %v889 = vsub.f32 %v651, %v825
        %v890 = vsub.f32 %v653, %v826
        %v891 = vsub.f32 %v655, %v827
        %v892 = vsub.f32 %v657, %v828
        %v893 = vsub.f32 %v661, %v829
        %v894 = vsub.f32 %v663, %v830
        %v895 = vsub.f32 %v665, %v831
        %v896 = vsub.f32 %v667, %v832
        %v897 = vsub.f32 %v671, %v833
        %v898 = vsub.f32 %v673, %v834
        %v899 = vsub.f32 %v675, %v835
        %v900 = vsub.f32 %v677, %v836
        %v901 = vsub.f32 %v681, %v837
        %v902 = vsub.f32 %v683, %v838
        %v903 = vsub.f32 %v685, %v839
        %v904 = vsub.f32 %v687, %v840
        %v905 = vmul.f32 %v841, 1.442695
        %v906 = vpow.pop %v905
        %v907 = vmul.f32 %v842, 1.442695
        %v908 = vpow.pop %v907
        %v909 = vmul.f32 %v843, 1.442695
        %v910 = vpow.pop %v909
        %v911 = vmul.f32 %v844, 1.442695
        %v912 = vpow.pop %v911
        %v913 = vmul.f32 %v845, 1.442695
        %v914 = vpow.pop %v913
        %v915 = vmul.f32 %v846, 1.442695
        %v916 = vpow.pop %v915
        %v917 = vmul.f32 %v847, 1.442695
        %v918 = vpow.pop %v917
        %v919 = vmul.f32 %v848, 1.442695
        %v920 = vpow.pop %v919
        %v921 = vmul.f32 %v849, 1.442695
        %v922 = vpow.pop %v921
        %v923 = vmul.f32 %v850, 1.442695
        %v924 = vpow.pop %v923
        %v925 = vmul.f32 %v851, 1.442695
        %v926 = vpow.pop %v925
        %v927 = vmul.f32 %v852, 1.442695
        %v928 = vpow.pop %v927
        %v929 = vmul.f32 %v853, 1.442695
        %v930 = vpow.pop %v929
        %v931 = vmul.f32 %v854, 1.442695
        %v932 = vpow.pop %v931
        %v933 = vmul.f32 %v855, 1.442695
        %v934 = vpow.pop %v933
        %v935 = vmul.f32 %v856, 1.442695
        %v936 = vpow.pop %v935
        %v937 = vmul.f32 %v857, 1.442695
        %v938 = vpow.pop %v937
        %v939 = vmul.f32 %v858, 1.442695
        %v940 = vpow.pop %v939
        %v941 = vmul.f32 %v859, 1.442695
        %v942 = vpow.pop %v941
        %v943 = vmul.f32 %v860, 1.442695
        %v944 = vpow.pop %v943
        %v945 = vmul.f32 %v861, 1.442695
        %v946 = vpow.pop %v945
        %v947 = vmul.f32 %v862, 1.442695
        %v948 = vpow.pop %v947
        %v949 = vmul.f32 %v863, 1.442695
        %v950 = vpow.pop %v949
        %v951 = vmul.f32 %v864, 1.442695
        %v952 = vpow.pop %v951
        %v953 = vmul.f32 %v865, 1.442695
        %v954 = vpow.pop %v953
        %v955 = vmul.f32 %v866, 1.442695
        %v956 = vpow.pop %v955
        %v957 = vmul.f32 %v867, 1.442695
        %v958 = vpow.pop %v957
        %v959 = vmul.f32 %v868, 1.442695
        %v960 = vpow.pop %v959
        %v961 = vmul.f32 %v869, 1.442695
        %v962 = vpow.pop %v961
        %v963 = vmul.f32 %v870, 1.442695
        %v964 = vpow.pop %v963
        %v965 = vmul.f32 %v871, 1.442695
        %v966 = vpow.pop %v965
        %v967 = vmul.f32 %v872, 1.442695
        %v968 = vpow.pop %v967
        %v969 = vmul.f32 %v873, 1.442695
        %v970 = vpow.pop %v969
        %v971 = vmul.f32 %v874, 1.442695
        %v972 = vpow.pop %v971
        %v973 = vmul.f32 %v875, 1.442695
        %v974 = vpow.pop %v973
        %v975 = vmul.f32 %v876, 1.442695
        %v976 = vpow.pop %v975
        %v977 = vmul.f32 %v877, 1.442695
        %v978 = vpow.pop %v977
        %v979 = vmul.f32 %v878, 1.442695
        %v980 = vpow.pop %v979
        %v981 = vmul.f32 %v879, 1.442695
        %v982 = vpow.pop %v981
        %v983 = vmul.f32 %v880, 1.442695
        %v984 = vpow.pop %v983
        %v985 = vmul.f32 %v881, 1.442695
        %v986 = vpow.pop %v985
        %v987 = vmul.f32 %v882, 1.442695
        %v988 = vpow.pop %v987
        %v989 = vmul.f32 %v883, 1.442695
        %v990 = vpow.pop %v989
        %v991 = vmul.f32 %v884, 1.442695
        %v992 = vpow.pop %v991
        %v993 = vmul.f32 %v885, 1.442695
        %v994 = vpow.pop %v993
        %v995 = vmul.f32 %v886, 1.442695
        %v996 = vpow.pop %v995
        %v997 = vmul.f32 %v887, 1.442695
        %v998 = vpow.pop %v997
        %v999 = vmul.f32 %v888, 1.442695
        %v1000 = vpow.pop %v999
        %v1001 = vmul.f32 %v889, 1.442695
        %v1002 = vpow.pop %v1001
        %v1003 = vmul.f32 %v890, 1.442695
        %v1004 = vpow.pop %v1003
        %v1005 = vmul.f32 %v891, 1.442695
        %v1006 = vpow.pop %v1005
        %v1007 = vmul.f32 %v892, 1.442695
        %v1008 = vpow.pop %v1007
        %v1009 = vmul.f32 %v893, 1.442695
        %v1010 = vpow.pop %v1009
        %v1011 = vmul.f32 %v894, 1.442695
        %v1012 = vpow.pop %v1011
        %v1013 = vmul.f32 %v895, 1.442695
        %v1014 = vpow.pop %v1013
        %v1015 = vmul.f32 %v896, 1.442695
        %v1016 = vpow.pop %v1015
        %v1017 = vmul.f32 %v897, 1.442695
        %v1018 = vpow.pop %v1017
        %v1019 = vmul.f32 %v898, 1.442695
        %v1020 = vpow.pop %v1019
        %v1021 = vmul.f32 %v899, 1.442695
        %v1022 = vpow.pop %v1021
        %v1023 = vmul.f32 %v900, 1.442695
        %v1024 = vpow.pop %v1023
        %v1025 = vmul.f32 %v901, 1.442695
        %v1026 = vpow.pop %v1025
        %v1027 = vmul.f32 %v902, 1.442695
        %v1028 = vpow.pop %v1027
        %v1029 = vmul.f32 %v903, 1.442695
        %v1030 = vpow.pop %v1029
        %v1031 = vmul.f32 %v904, 1.442695
        %v1032 = vpow.pop %v1031
        %v1033 = vpack.c.bf16 %v910, %v906
        %v1034 = vpack.c.bf16 %v912, %v908
        %v1035 = vpack.c.bf16 %v918, %v914
        %v1036 = vpack.c.bf16 %v920, %v916
        %v1037 = vpack.c.bf16 %v926, %v922
        %v1038 = vpack.c.bf16 %v928, %v924
        %v1039 = vpack.c.bf16 %v934, %v930
        %v1040 = vpack.c.bf16 %v936, %v932
        %v1041 = vpack.c.bf16 %v942, %v938
        %v1042 = vpack.c.bf16 %v944, %v940
        %v1043 = vpack.c.bf16 %v950, %v946
        %v1044 = vpack.c.bf16 %v952, %v948
        %v1045 = vpack.c.bf16 %v958, %v954
        %v1046 = vpack.c.bf16 %v960, %v956
        %v1047 = vpack.c.bf16 %v966, %v962
        %v1048 = vpack.c.bf16 %v968, %v964
        %v1049 = vpack.c.bf16 %v974, %v970
        %v1050 = vpack.c.bf16 %v976, %v972
        %v1051 = vpack.c.bf16 %v982, %v978
        %v1052 = vpack.c.bf16 %v984, %v980
        %v1053 = vpack.c.bf16 %v990, %v986
        %v1054 = vpack.c.bf16 %v992, %v988
        %v1055 = vpack.c.bf16 %v998, %v994
        %v1056 = vpack.c.bf16 %v1000, %v996
        %v1057 = vpack.c.bf16 %v1006, %v1002
        %v1058 = vpack.c.bf16 %v1008, %v1004
        %v1059 = vpack.c.bf16 %v1014, %v1010
        %v1060 = vpack.c.bf16 %v1016, %v1012
        %v1061 = vpack.c.bf16 %v1022, %v1018
        %v1062 = vpack.c.bf16 %v1024, %v1020
        %v1063 = vpack.c.bf16 %v1030, %v1026
        %v1064 = vpack.c.bf16 %v1032, %v1028
        %v1065 = vld [vmem:[%s4] sm:$0xf]
        %v1066 = vld [vmem:[%s4 + $0x4] sm:$0xf]
        %v1067 = vld [vmem:[%s4 + $0x8] sm:$0xf]
        %v1068 = vld [vmem:[%s4 + $0xc] sm:$0xf]
        %v1069 = vld [vmem:[%s4 + $0x10] sm:$0xf]
        %v1070 = vld [vmem:[%s4 + $0x14] sm:$0xf]
        %v1071 = vld [vmem:[%s4 + $0x18] sm:$0xf]
        %v1072 = vld [vmem:[%s4 + $0x1c] sm:$0xf]
        %v1073 = vld [vmem:[%s4 + $0x20] sm:$0xf]
        %v1074 = vld [vmem:[%s4 + $0x24] sm:$0xf]
        %v1075 = vld [vmem:[%s4 + $0x28] sm:$0xf]
        %v1076 = vld [vmem:[%s4 + $0x2c] sm:$0xf]
        %v1077 = vld [vmem:[%s4 + $0x30] sm:$0xf]
        %v1078 = vld [vmem:[%s4 + $0x34] sm:$0xf]
        %v1079 = vld [vmem:[%s4 + $0x38] sm:$0xf]
        %v1080 = vld [vmem:[%s4 + $0x3c] sm:$0xf]
        %v1081 = vld [vmem:[%s4 + $0x40] sm:$0xf]
        %v1082 = vld [vmem:[%s4 + $0x44] sm:$0xf]
        %v1083 = vld [vmem:[%s4 + $0x48] sm:$0xf]
        %v1084 = vld [vmem:[%s4 + $0x4c] sm:$0xf]
        %v1085 = vld [vmem:[%s4 + $0x50] sm:$0xf]
        %v1086 = vld [vmem:[%s4 + $0x54] sm:$0xf]
        %v1087 = vld [vmem:[%s4 + $0x58] sm:$0xf]
        %v1088 = vld [vmem:[%s4 + $0x5c] sm:$0xf]
        %v1089 = vld [vmem:[%s4 + $0x60] sm:$0xf]
        %v1090 = vld [vmem:[%s4 + $0x64] sm:$0xf]
        %v1091 = vld [vmem:[%s4 + $0x68] sm:$0xf]
        %v1092 = vld [vmem:[%s4 + $0x6c] sm:$0xf]
        %v1093 = vld [vmem:[%s4 + $0x70] sm:$0xf]
        %v1094 = vld [vmem:[%s4 + $0x74] sm:$0xf]
        %v1095 = vld [vmem:[%s4 + $0x78] sm:$0xf]
        %v1096 = vld [vmem:[%s4 + $0x7c] sm:$0xf]
        %v1129 = vunpack.c.l.b16 %v1065
        %v1130 = vunpack.c.l.b16 %v1066
        %v1131 = vunpack.c.l.b16 %v1067
        %v1132 = vunpack.c.l.b16 %v1068
        %v1133 = vunpack.c.l.b16 %v1069
        %v1134 = vunpack.c.l.b16 %v1070
        %v1135 = vunpack.c.l.b16 %v1071
        %v1136 = vunpack.c.l.b16 %v1072
        %v1137 = vunpack.c.l.b16 %v1073
        %v1138 = vunpack.c.l.b16 %v1074
        %v1139 = vunpack.c.l.b16 %v1075
        %v1140 = vunpack.c.l.b16 %v1076
        %v1141 = vunpack.c.l.b16 %v1077
        %v1142 = vunpack.c.l.b16 %v1078
        %v1143 = vunpack.c.l.b16 %v1079
        %v1144 = vunpack.c.l.b16 %v1080
        %v1145 = vunpack.c.l.b16 %v1081
        %v1146 = vunpack.c.l.b16 %v1082
        %v1147 = vunpack.c.l.b16 %v1083
        %v1148 = vunpack.c.l.b16 %v1084
        %v1149 = vunpack.c.l.b16 %v1085
        %v1150 = vunpack.c.l.b16 %v1086
        %v1151 = vunpack.c.l.b16 %v1087
        %v1152 = vunpack.c.l.b16 %v1088
        %v1153 = vunpack.c.l.b16 %v1089
        %v1154 = vunpack.c.l.b16 %v1090
        %v1155 = vunpack.c.l.b16 %v1091
        %v1156 = vunpack.c.l.b16 %v1092
        %v1157 = vunpack.c.l.b16 %v1093
        %v1158 = vunpack.c.l.b16 %v1094
        %v1159 = vunpack.c.l.b16 %v1095
        %v1160 = vunpack.c.l.b16 %v1096
        %v1161 = vpack.c.b16 %v1130, %v1129
        %v1162 = vpack.c.b16 %v1132, %v1131
        %v1163 = vpack.c.b16 %v1134, %v1133
        %v1164 = vpack.c.b16 %v1136, %v1135
        %v1165 = vpack.c.b16 %v1138, %v1137
        %v1166 = vpack.c.b16 %v1140, %v1139
        %v1167 = vpack.c.b16 %v1142, %v1141
        %v1168 = vpack.c.b16 %v1144, %v1143
        %v1169 = vpack.c.b16 %v1146, %v1145
        %v1170 = vpack.c.b16 %v1148, %v1147
        %v1171 = vpack.c.b16 %v1150, %v1149
        %v1172 = vpack.c.b16 %v1152, %v1151
        %v1173 = vpack.c.b16 %v1154, %v1153
        %v1174 = vpack.c.b16 %v1156, %v1155
        %v1175 = vpack.c.b16 %v1158, %v1157
        %v1176 = vpack.c.b16 %v1160, %v1159
        %1193 = vmatprep.subr.bf16.mxu0 0
        %1194 = vmatpush1.bf16.msra.mxu0 %v1168
        %1195 = vmatprep.subr.bf16.mxu0 0
        %1196 = vmatpush1.bf16.msra.mxu0 %v1167
        %1197 = vmatprep.subr.bf16.mxu0 0
        %1198 = vmatpush1.bf16.msra.mxu0 %v1166
        %1199 = vmatprep.subr.bf16.mxu0 0
        %1200 = vmatpush1.bf16.msra.mxu0 %v1165
        %1201 = vmatprep.subr.bf16.mxu0 0
        %1202 = vmatpush1.bf16.msra.mxu0 %v1164
        %1203 = vmatprep.subr.bf16.mxu0 0
        %1204 = vmatpush1.bf16.msra.mxu0 %v1163
        %1205 = vmatprep.subr.bf16.mxu0 0
        %1206 = vmatpush1.bf16.msra.mxu0 %v1162
        %1207 = vmatprep.subr.bf16.mxu0 0
        %1208 = vmatpush1.bf16.msra.mxu0 %v1161
        %1209 = vmatprep.subr.bf16.mxu0 0
        %1210 = vmatpush2.bf16.msra.mxu0 %v1176
        %1211 = vmatprep.subr.bf16.mxu0 0
        %1212 = vmatpush2.bf16.msra.mxu0 %v1175
        %1213 = vmatprep.subr.bf16.mxu0 0
        %1214 = vmatpush2.bf16.msra.mxu0 %v1174
        %1215 = vmatprep.subr.bf16.mxu0 0
        %1216 = vmatpush2.bf16.msra.mxu0 %v1173
        %1217 = vmatprep.subr.bf16.mxu0 0
        %1218 = vmatpush2.bf16.msra.mxu0 %v1172
        %1219 = vmatprep.subr.bf16.mxu0 0
        %1220 = vmatpush2.bf16.msra.mxu0 %v1171
        %1221 = vmatprep.subr.bf16.mxu0 0
        %1222 = vmatpush2.bf16.msra.mxu0 %v1170
        %1223 = vmatprep.subr.bf16.mxu0 0
        %1224 = vmatpush2.bf16.msra.mxu0 %v1169
        %1225 = vmatprep.mubr.bf16.mxu0 %v1034
        %1226 = vmatmul.mubr.bf16.gmra.mxu0 %v1033
        %v1227 = vpop.f32.mrf.mxu0
        %v1228 = vadd.f32 0.0, %v1227
        %v1229 = vpop.f32.mrf.mxu0
        %v1230 = vpop.f32.mrf.mxu0
        %v1231 = vadd.f32 0.0, %v1230
        %v1232 = vpop.f32.mrf.mxu0
        %1233 = vmatprep.mubr.bf16.mxu0 %v1036
        %1234 = vmatmul.mubr.bf16.gmra.mxu0 %v1035
        %v1235 = vpop.f32.mrf.mxu0
        %v1236 = vadd.f32 0.0, %v1235
        %v1237 = vpop.f32.mrf.mxu0
        %v1238 = vpop.f32.mrf.mxu0
        %v1239 = vadd.f32 0.0, %v1238
        %v1240 = vpop.f32.mrf.mxu0
        %1241 = vmatprep.mubr.bf16.mxu0 %v1038
        %1242 = vmatmul.mubr.bf16.gmra.mxu0 %v1037
        %v1243 = vpop.f32.mrf.mxu0
        %v1244 = vadd.f32 0.0, %v1243
        %v1245 = vpop.f32.mrf.mxu0
        %v1246 = vpop.f32.mrf.mxu0
        %v1247 = vadd.f32 0.0, %v1246
        %v1248 = vpop.f32.mrf.mxu0
        %1249 = vmatprep.mubr.bf16.mxu0 %v1040
        %1250 = vmatmul.mubr.bf16.gmra.mxu0 %v1039
        %v1251 = vpop.f32.mrf.mxu0
        %v1252 = vadd.f32 0.0, %v1251
        %v1253 = vpop.f32.mrf.mxu0
        %v1254 = vpop.f32.mrf.mxu0
        %v1255 = vadd.f32 0.0, %v1254
        %v1256 = vpop.f32.mrf.mxu0
        %1257 = vmatprep.mubr.bf16.mxu0 %v1042
        %1258 = vmatmul.mubr.bf16.gmra.mxu0 %v1041
        %v1259 = vpop.f32.mrf.mxu0
        %v1260 = vadd.f32 0.0, %v1259
        %v1261 = vpop.f32.mrf.mxu0
        %v1262 = vpop.f32.mrf.mxu0
        %v1263 = vadd.f32 0.0, %v1262
        %v1264 = vpop.f32.mrf.mxu0
        %1265 = vmatprep.mubr.bf16.mxu0 %v1044
        %1266 = vmatmul.mubr.bf16.gmra.mxu0 %v1043
        %v1267 = vpop.f32.mrf.mxu0
        %v1268 = vadd.f32 0.0, %v1267
        %v1269 = vpop.f32.mrf.mxu0
        %v1270 = vpop.f32.mrf.mxu0
        %v1271 = vadd.f32 0.0, %v1270
        %v1272 = vpop.f32.mrf.mxu0
        %1273 = vmatprep.mubr.bf16.mxu0 %v1046
        %1274 = vmatmul.mubr.bf16.gmra.mxu0 %v1045
        %v1275 = vpop.f32.mrf.mxu0
        %v1276 = vadd.f32 0.0, %v1275
        %v1277 = vpop.f32.mrf.mxu0
        %v1278 = vpop.f32.mrf.mxu0
        %v1279 = vadd.f32 0.0, %v1278
        %v1280 = vpop.f32.mrf.mxu0
        %1281 = vmatprep.mubr.bf16.mxu0 %v1048
        %1282 = vmatmul.mubr.bf16.gmra.mxu0 %v1047
        %v1283 = vpop.f32.mrf.mxu0
        %v1284 = vadd.f32 0.0, %v1283
        %v1285 = vpop.f32.mrf.mxu0
        %v1286 = vpop.f32.mrf.mxu0
        %v1287 = vadd.f32 0.0, %v1286
        %v1288 = vpop.f32.mrf.mxu0
        %1289 = vmatprep.mubr.bf16.mxu0 %v1050
        %1290 = vmatmul.mubr.bf16.gmra.mxu0 %v1049
        %v1291 = vpop.f32.mrf.mxu0
        %v1292 = vadd.f32 0.0, %v1291
        %v1293 = vpop.f32.mrf.mxu0
        %v1294 = vpop.f32.mrf.mxu0
        %v1295 = vadd.f32 0.0, %v1294
        %v1296 = vpop.f32.mrf.mxu0
        %1297 = vmatprep.mubr.bf16.mxu0 %v1052
        %1298 = vmatmul.mubr.bf16.gmra.mxu0 %v1051
        %v1299 = vpop.f32.mrf.mxu0
        %v1300 = vadd.f32 0.0, %v1299
        %v1301 = vpop.f32.mrf.mxu0
        %v1302 = vpop.f32.mrf.mxu0
        %v1303 = vadd.f32 0.0, %v1302
        %v1304 = vpop.f32.mrf.mxu0
        %1305 = vmatprep.mubr.bf16.mxu0 %v1054
        %1306 = vmatmul.mubr.bf16.gmra.mxu0 %v1053
        %v1307 = vpop.f32.mrf.mxu0
        %v1308 = vadd.f32 0.0, %v1307
        %v1309 = vpop.f32.mrf.mxu0
        %v1310 = vpop.f32.mrf.mxu0
        %v1311 = vadd.f32 0.0, %v1310
        %v1312 = vpop.f32.mrf.mxu0
        %1313 = vmatprep.mubr.bf16.mxu0 %v1056
        %1314 = vmatmul.mubr.bf16.gmra.mxu0 %v1055
        %v1315 = vpop.f32.mrf.mxu0
        %v1316 = vadd.f32 0.0, %v1315
        %v1317 = vpop.f32.mrf.mxu0
        %v1318 = vpop.f32.mrf.mxu0
        %v1319 = vadd.f32 0.0, %v1318
        %v1320 = vpop.f32.mrf.mxu0
        %1321 = vmatprep.mubr.bf16.mxu0 %v1058
        %1322 = vmatmul.mubr.bf16.gmra.mxu0 %v1057
        %v1323 = vpop.f32.mrf.mxu0
        %v1324 = vadd.f32 0.0, %v1323
        %v1325 = vpop.f32.mrf.mxu0
        %v1326 = vpop.f32.mrf.mxu0
        %v1327 = vadd.f32 0.0, %v1326
        %v1328 = vpop.f32.mrf.mxu0
        %1329 = vmatprep.mubr.bf16.mxu0 %v1060
        %1330 = vmatmul.mubr.bf16.gmra.mxu0 %v1059
        %v1331 = vpop.f32.mrf.mxu0
        %v1332 = vadd.f32 0.0, %v1331
        %v1333 = vpop.f32.mrf.mxu0
        %v1334 = vpop.f32.mrf.mxu0
        %v1335 = vadd.f32 0.0, %v1334
        %v1336 = vpop.f32.mrf.mxu0
        %1337 = vmatprep.mubr.bf16.mxu0 %v1062
        %1338 = vmatmul.mubr.bf16.gmra.mxu0 %v1061
        %v1339 = vpop.f32.mrf.mxu0
        %v1340 = vadd.f32 0.0, %v1339
        %v1341 = vpop.f32.mrf.mxu0
        %v1342 = vpop.f32.mrf.mxu0
        %v1343 = vadd.f32 0.0, %v1342
        %v1344 = vpop.f32.mrf.mxu0
        %1345 = vmatprep.mubr.bf16.mxu0 %v1064
        %1346 = vmatmul.mubr.bf16.gmra.mxu0 %v1063
        %v1347 = vpop.f32.mrf.mxu0
        %v1348 = vadd.f32 0.0, %v1347
        %v1349 = vpop.f32.mrf.mxu0
        %v1350 = vpop.f32.mrf.mxu0
        %v1351 = vadd.f32 0.0, %v1350
        %v1352 = vpop.f32.mrf.mxu0
        %1353 = vdwg.mxu0
        %1354 = vst [vmem:[%s218] sm:$0xff] %v1228
        %1355 = vst [vmem:[%s218 + $0x8] sm:$0xff] %v1231
        %1356 = vst [vmem:[%s218 + $0x10] sm:$0xff] %v1236
        %1357 = vst [vmem:[%s218 + $0x18] sm:$0xff] %v1239
        %1358 = vst [vmem:[%s218 + $0x20] sm:$0xff] %v1244
        %1359 = vst [vmem:[%s218 + $0x28] sm:$0xff] %v1247
        %1360 = vst [vmem:[%s218 + $0x30] sm:$0xff] %v1252
        %1361 = vst [vmem:[%s218 + $0x38] sm:$0xff] %v1255
        %1362 = vst [vmem:[%s218 + $0x40] sm:$0xff] %v1260
        %1363 = vst [vmem:[%s218 + $0x48] sm:$0xff] %v1263
        %1364 = vst [vmem:[%s218 + $0x50] sm:$0xff] %v1268
        %1365 = vst [vmem:[%s218 + $0x58] sm:$0xff] %v1271
        %1366 = vst [vmem:[%s218 + $0x60] sm:$0xff] %v1276
        %1367 = vst [vmem:[%s218 + $0x68] sm:$0xff] %v1279
        %1368 = vst [vmem:[%s218 + $0x70] sm:$0xff] %v1284
        %1369 = vst [vmem:[%s218 + $0x78] sm:$0xff] %v1287
        %1370 = vst [vmem:[%s218 + $0x80] sm:$0xff] %v1292
        %1371 = vst [vmem:[%s218 + $0x88] sm:$0xff] %v1295
        %1372 = vst [vmem:[%s218 + $0x90] sm:$0xff] %v1300
        %1373 = vst [vmem:[%s218 + $0x98] sm:$0xff] %v1303
        %1374 = vst [vmem:[%s218 + $0xa0] sm:$0xff] %v1308
        %1375 = vst [vmem:[%s218 + $0xa8] sm:$0xff] %v1311
        %1376 = vst [vmem:[%s218 + $0xb0] sm:$0xff] %v1316
        %1377 = vst [vmem:[%s218 + $0xb8] sm:$0xff] %v1319
        %1378 = vst [vmem:[%s218 + $0xc0] sm:$0xff] %v1324
        %1379 = vst [vmem:[%s218 + $0xc8] sm:$0xff] %v1327
        %1380 = vst [vmem:[%s218 + $0xd0] sm:$0xff] %v1332
        %1381 = vst [vmem:[%s218 + $0xd8] sm:$0xff] %v1335
        %1382 = vst [vmem:[%s218 + $0xe0] sm:$0xff] %v1340
        %1383 = vst [vmem:[%s218 + $0xe8] sm:$0xff] %v1343
        %1384 = vst [vmem:[%s218 + $0xf0] sm:$0xff] %v1348
        %1385 = vst [vmem:[%s218 + $0xf8] sm:$0xff] %v1351
        %s1386 = sand.u32 %s137, 1
        %s1387 = scalar_lea.sflag [#allocation3], %s1386
        %s1388 = sand.u32 %s137, 1
        %s1389 = smul.addr %s1388, 256
        %s1390 = scalar_lea.vmem [#allocation2], %s1389
        // Predicated region
        $region41: #{tpu_custom_call.1} parent=39 // pred_check
          %p1391 = pneg %p147
        $region42: #{tpu_custom_call.1} parent=39 // pred_check_branch
          %1393 = sbr.rel (%p1391) target = $region44
        $region43: #{tpu_custom_call.1} parent=39 // pred_region
          %s1394 = smul.u32 32, %s19
          %s1396 = ssub.s32 4096, 4096
          %1397 = vsyncadd %s1387, %s1396
          %s1398 = smul.addr %s1394, 128
          %s1399 = scalar_lea.hbm %s5, %s1398
          %s1400 = sshll.u32 %s1390, 4
          %s1401 = int_to_ptr.vmem [resolvable:$true] %s1400
          %1406 = dma.vmem_to_hbm [thread:$0]  %s1401, 4096, %s1399, %s1387, 128, 128, 8
        $region44: #{tpu_custom_call.1} parent=39 // pred_fallthru
          _
      $region40: #{tpu_custom_call.1} parent=5 // pred_fallthru
        _
      %p1407 = scmp.le.s32.totalorder 2, %s14
      // Predicated region
      $region45: #{tpu_custom_call.1} parent=5 // pred_check
        %p1408 = pneg %p1407
      $region46: #{tpu_custom_call.1} parent=5 // pred_check_branch
        %1410 = sbr.rel (%p1408) target = $region48
      $region47: #{tpu_custom_call.1} parent=5 // pred_region
        %s1411 = ssub.s32 %s14, 2
        // Predicated region
        $region49: #{tpu_custom_call.1} parent=47 // pred_check
          %p1412 = pneg %p153
        $region50: #{tpu_custom_call.1} parent=47 // pred_check_branch
          %1414 = sbr.rel (%p1412) target = $region52
        $region51: #{tpu_custom_call.1} parent=47 // pred_region
          %s1415 = sand.u32 %s138, 1
          %s1416 = scalar_lea.sflag [#allocation3], %s1415
          %s1417 = sand.u32 %s138, 1
          %s1418 = smul.addr %s1417, 256
          %s1419 = scalar_lea.vmem [#allocation2], %s1418
          %1420 = dma.done %s1416, 4096
        $region52: #{tpu_custom_call.1} parent=47 // pred_fallthru
          _
      $region48: #{tpu_custom_call.1} parent=5 // pred_fallthru
        _
    $region6: #{tpu_custom_call.1} parent=1 // loop_footer
      %s18 = sadd.s32 1, %s14
    $region7: #{tpu_custom_call.1} parent=1 // loop_footer_branch
      %13 = sbr.rel target = $region3
    $region8: #{tpu_custom_call.1} parent=1 // loop_exit
      _
    %1421 = vsyncpa [#allocation3], 1
    %s1422 = scalar_lea.sflag [#allocation3], 1
    %1423 = vsyncpa %s1422, 1

</llo_original>
